<compile_context>
chip_gen: v6e
topology: v6e:2x2x1
jax: 0.10.0
libtpu: 0.0.40
codegen_flags: <defaults>
</compile_context>

<pallas_src>
import functools
import math

import jax
import jax.numpy as jnp
from jax.experimental import pallas as pl
from jax.experimental.pallas import tpu as pltpu


def _simclr_kernel(x_ref, xt_ref, out_ref, m_ref, l_ref, pos_ref, *,
                   tm, tk, n_total, bs, s_scale, out_lanes, exp_bf16):
    i = pl.program_id(0)              # row-tile index  ("parallel")
    j = pl.program_id(1)              # col-tile index  ("arbitrary" reduction)
    n_col = pl.num_programs(1)

    # Init the online-logsumexp + positive accumulators at the first col step.
    @pl.when(j == 0)
    def _():
        m_ref[...] = jnp.full(m_ref.shape, -jnp.inf, dtype=jnp.float32)
        l_ref[...] = jnp.zeros(l_ref.shape, dtype=jnp.float32)
        pos_ref[...] = jnp.zeros(pos_ref.shape, dtype=jnp.float32)

    # (tm, tk) similarity tile; RHS is already (D, tk), MXU-native layout.
    # Operands stay in the compute dtype (bf16 stays bf16); f32 accumulation.
    s = jax.lax.dot_general(
        x_ref[...], xt_ref[...],
        dimension_numbers=(((1,), (0,)), ((), ())),
        preferred_element_type=jnp.float32,
    )
    if s_scale != 1.0:
        # Only used when 1/temp could not be folded exactly into the operands.
        s = s * jnp.float32(s_scale)

    row0 = i * tm
    col0 = j * tk
    rows = row0 + jax.lax.broadcasted_iota(jnp.int32, (tm, 1), 0)   # (tm, 1)
    cols = col0 + jax.lax.broadcasted_iota(jnp.int32, (1, tk), 1)   # (1, tk)

    # ---- positive logits: shifted diagonal cols == (rows + bs) % N ----------
    # Scalar intersection test for the (possibly wrapping) band of this row
    # tile with this column tile; the per-element mask handles the wrap.
    c_start = (row0 + bs) % n_total
    wraps = c_start + tm > n_total
    touch_nw = jnp.logical_and(c_start < col0 + tk, col0 < c_start + tm)
    touch_w = jnp.logical_or(c_start < col0 + tk, col0 < c_start + tm - n_total)
    touches_pos = jnp.where(wraps, touch_w, touch_nw)

    @pl.when(touches_pos)
    def _():
        pos_cols = (rows + bs) % n_total                 # (tm, 1)
        pmask = pos_cols == cols                         # (tm, tk)
        pos_ref[...] += jnp.sum(jnp.where(pmask, s, 0.0), axis=1, keepdims=True)

    # ---- diagonal -inf mask (self-similarity), only on touching tiles ------
    touches_diag = jnp.logical_and(row0 < col0 + tk, col0 < row0 + tm)

    def _mask_diag(t):
        return jnp.where(rows == cols, -jnp.inf, t)

    s = jax.lax.cond(touches_diag, _mask_diag, lambda t: t, s)

    # ---- online logsumexp over (positive + negatives) column axis ----------
    m_prev = m_ref[...]
    m_new = jnp.maximum(m_prev, jnp.max(s, axis=1, keepdims=True))    # (tm, 1)
    alpha = jnp.exp(m_prev - m_new)
    if exp_bf16:
        p = jnp.exp((s - m_new).astype(jnp.bfloat16)).astype(jnp.float32)
    else:
        p = jnp.exp(s - m_new)
    l_ref[...] = alpha * l_ref[...] + jnp.sum(p, axis=1, keepdims=True)
    m_ref[...] = m_new

    # Finalize this row tile on the last column step.
    @pl.when(j == n_col - 1)
    def _():
        lse = m_ref[...] + jnp.log(l_ref[...])                         # (tm, 1)
        partial = jnp.sum(lse - pos_ref[...], axis=0, keepdims=True)   # (1, 1)
        # Lane-dense 128-wide store; the wrapper reads lane 0.
        out_ref[...] = jnp.broadcast_to(partial.reshape(1, 1, 1),
                                        (1, 1, out_lanes))


def _pick_tile(n, candidates, *, max_full=1024):
    # Prefer the largest candidate dividing n while keeping >= 2 tiles so the
    # "parallel" row axis can shard across v7x's two TensorCores.
    for c in candidates:
        if n % c == 0 and n // c >= 2:
            return c
    for c in candidates:
        if n % c == 0:
            return c
    if n <= max_full:
        return n          # single full-size tile (tiny problems only)
    raise ValueError(
        f"No tile candidate divides N={n}; pad N or pass tm/tk explicitly.")


def _vmem_estimate(tm, tk, d, in_itemsize):
    inputs = 2 * (tm * d + d * tk) * in_itemsize   # double-buffered input tiles
    temps = 5 * tm * tk * 4                        # f32 (tm, tk) temporaries
    scratch = 3 * tm * 4 + 2 * 128 * 4
    return inputs + temps + scratch


def simclr_loss(x, *, bs, n_views=2, temperature=0.5, tm=None, tk=None,
                compute_dtype=None, exp_bf16=False):
    """SimCLR InfoNCE loss for X of shape (n_views * bs, D)."""
    n, d = x.shape
    assert n == bs * n_views, "X must stack n_views views of the batch"
    # TODO(synk): positive selection assumes n_views == 2 (single positive at
    # column (i + bs) % N); generalize for n_views > 2.

    cdt = jnp.dtype(compute_dtype) if compute_dtype is not None else x.dtype
    inv_temp = 1.0 / float(temperature)

    # Fold 1/temp into the LHS rows once in the wrapper (O(N*D)) whenever that
    # is exact in the compute dtype; otherwise scale the f32 s tile in-kernel.
    frac, _ = math.frexp(inv_temp)
    pow2 = (frac == 0.5)
    if cdt == jnp.dtype(jnp.float32) or pow2:
        x_lhs = (x.astype(jnp.float32) * jnp.float32(inv_temp)).astype(cdt)
        s_scale = 1.0
    else:
        x_lhs = x.astype(cdt)
        s_scale = inv_temp
    xt = x.astype(cdt).T        # (D, N): column tiles arrive MXU-native (D, tk)

    # Tile sizes: large multiples of (8, 128) that divide N, else full dim.
    tm_auto = tm is None
    tk_auto = tk is None
    if tm_auto:
        tm = _pick_tile(n, (1024, 512, 256, 128, 64, 32, 16, 8))
    if tk_auto:
        tk = _pick_tile(n, (512, 256, 128))
    assert n % tm == 0 and n % tk == 0

    # Generation-correct VMEM budgeting: query capacity (64 MiB/core on v7x,
    # 128 MiB on v5e/v6e), keep headroom, shrink auto-picked tiles if needed,
    # and always set the scoped limit (v5e's default is only 16 MiB).
    try:
        vmem_cap = int(pltpu.get_tpu_info().vmem_capacity_bytes)
    except Exception:
        vmem_cap = 64 * 1024 * 1024   # conservative fallback (v7x per-core)
    budget = vmem_cap - 16 * 1024 * 1024
    itemsize = jnp.dtype(cdt).itemsize
    est = _vmem_estimate(tm, tk, d, itemsize)
    while est > budget and tk_auto and tk > 128 and tk % 2 == 0 and n % (tk // 2) == 0:
        tk //= 2
        est = _vmem_estimate(tm, tk, d, itemsize)
    while est > budget and tm_auto and tm > 8 and tm % 2 == 0 and n % (tm // 2) == 0:
        tm //= 2
        est = _vmem_estimate(tm, tk, d, itemsize)
    vmem_limit = int(min(max(2 * est, 32 * 1024 * 1024),
                         vmem_cap - 8 * 1024 * 1024))

    out_lanes = 128
    num_row_tiles = n // tm
    grid = (num_row_tiles, n // tk)

    kernel = functools.partial(
        _simclr_kernel, tm=tm, tk=tk, n_total=n, bs=bs, s_scale=s_scale,
        out_lanes=out_lanes, exp_bf16=exp_bf16)

    out = pl.pallas_call(
        kernel,
        out_shape=jax.ShapeDtypeStruct((num_row_tiles, 1, out_lanes),
                                       jnp.float32),
        grid_spec=pltpu.PrefetchScalarGridSpec(
            num_scalar_prefetch=0,
            grid=grid,
            in_specs=[
                pl.BlockSpec((tm, d), lambda i, j: (i, 0)),   # query row tile
                pl.BlockSpec((d, tk), lambda i, j: (0, j)),   # key column tile
            ],
            out_specs=pl.BlockSpec((1, 1, out_lanes), lambda i, j: (i, 0, 0)),
            scratch_shapes=[
                pltpu.VMEM((tm, 1), jnp.float32),   # running max  m
                pltpu.VMEM((tm, 1), jnp.float32),   # running sum  l
                pltpu.VMEM((tm, 1), jnp.float32),   # positive-logit accumulator
            ],
        ),
        compiler_params=pltpu.CompilerParams(
            dimension_semantics=("parallel", "arbitrary"),
            vmem_limit_bytes=vmem_limit,
        ),
    )(x_lhs, xt)

    return jnp.sum(out[:, 0, 0]) / jnp.float32(n)


def _simclr_loss_ref(x, *, bs, n_views=2, temperature=0.5):
    # Pure-JAX reference mirroring the PyTorch code path.
    n = x.shape[0]
    sim = jnp.matmul(x, x.T, precision=jax.lax.Precision.HIGHEST) / temperature
    i = jnp.arange(n)
    pos = sim[i, (i + bs) % n]
    s = jnp.where(jnp.eye(n, dtype=bool), -jnp.inf, sim)
    lse = jax.scipy.special.logsumexp(s, axis=1)
    return jnp.mean(lse - pos)


if __name__ == "__main__":
    temperature = 0.5

    # Config 1: tiny single-tile case matching the module forward.
    bs, n_views, d = 4, 2, 32
    x = jax.random.normal(jax.random.PRNGKey(0), (n_views * bs, d),
                          dtype=jnp.float32)
    loss = jax.block_until_ready(
        simclr_loss(x, bs=bs, n_views=n_views, temperature=temperature))
    ref = _simclr_loss_ref(x, bs=bs, n_views=n_views, temperature=temperature)
    assert jnp.allclose(loss, ref, rtol=2e-5, atol=2e-5), (loss, ref)

    # Config 2: multi-tile 2x2 grid with the new default large tiles
    # (tm=512, tk=512): exercises the online logsumexp across column steps,
    # in-tile positive extraction, diagonal-only masking and the parallel
    # row axis (2 row tiles -> megacore-shardable on v7x).
    bs2, d2 = 512, 128
    x2 = jax.random.normal(jax.random.PRNGKey(1), (2 * bs2, d2),
                           dtype=jnp.float32)
    loss2 = jax.block_until_ready(
        simclr_loss(x2, bs=bs2, n_views=2, temperature=temperature))
    ref2 = _simclr_loss_ref(x2, bs=bs2, n_views=2, temperature=temperature)
    assert jnp.allclose(loss2, ref2, rtol=1e-4, atol=1e-4), (loss2, ref2)

    # Config 3: bs not a multiple of tm, so one row tile straddles the batch
    # boundary and the positive band wraps around column 0 inside the tile.
    bs3, d3 = 12, 32
    x3 = jax.random.normal(jax.random.PRNGKey(2), (2 * bs3, d3),
                           dtype=jnp.float32)
    loss3 = jax.block_until_ready(
        simclr_loss(x3, bs=bs3, n_views=2, temperature=temperature))
    ref3 = _simclr_loss_ref(x3, bs=bs3, n_views=2, temperature=temperature)
    assert jnp.allclose(loss3, ref3, rtol=2e-5, atol=2e-5), (loss3, ref3)

    # Config 4: bf16 operands with f32 accumulation (recommended fast path);
    # compared against the f32 reference with a loose tolerance.
    loss4 = jax.block_until_ready(
        simclr_loss(x2, bs=bs2, n_views=2, temperature=temperature,
                    compute_dtype=jnp.bfloat16))
    assert jnp.allclose(loss4, ref2, rtol=5e-2, atol=5e-2), (loss4, ref2)

    print("KERNEL_OK")
</pallas_src>

<mosaic_0001>
module attributes {stable_mosaic.version = 11 : i64} {
  func.func @_simclr_kernel(%arg0: i32, %arg1: i32, %arg2: memref<8x32xf32, #tpu.memory_space<vmem>>, %arg3: memref<32x8xf32, #tpu.memory_space<vmem>>, %arg4: memref<1x1x128xf32, #tpu.memory_space<vmem>>, %arg5: memref<8x1xf32, #tpu.memory_space<vmem>>, %arg6: memref<8x1xf32, #tpu.memory_space<vmem>>, %arg7: memref<8x1xf32, #tpu.memory_space<vmem>>) attributes {dimension_semantics = [#tpu.dimension_semantics<parallel>, #tpu.dimension_semantics<arbitrary>], iteration_bounds = array<i64: 1, 1>, scalar_prefetch = 0 : i64, scratch_operands = 3 : i64, tpu.core_type = #tpu.core_type<tc>, window_params = [{transform_indices = @transform_0, window_bounds = array<i64: 8, 32>}, {transform_indices = @transform_1, window_bounds = array<i64: 32, 8>}, {transform_indices = @transform_2, window_bounds = array<i64: 1, 1, 128>}]} {
    %c0_i32 = arith.constant 0 : i32
    %0 = arith.cmpi eq, %arg1, %c0_i32 : i32
    %1 = arith.extui %0 : i1 to i32
    %c0_i32_0 = arith.constant 0 : i32
    %2 = arith.cmpi ne, %1, %c0_i32_0 : i32
    scf.if %2 {
      %cst_33 = arith.constant 0xFF800000 : f32
      %68 = vector.broadcast %cst_33 : f32 to vector<8x1xf32>
      %c0_34 = arith.constant 0 : index
      %c0_35 = arith.constant 0 : index
      %69 = vector.load %arg5[%c0_34, %c0_35] : memref<8x1xf32, #tpu.memory_space<vmem>>, vector<8x1xf32>
      tpu.vector_store %arg5[%c0_34, %c0_35], %68 {strides = array<i32>} : memref<8x1xf32, #tpu.memory_space<vmem>>, vector<8x1xf32>,
      %cst_36 = arith.constant 0.000000e+00 : f32
      %70 = vector.broadcast %cst_36 : f32 to vector<8x1xf32>
      %c0_37 = arith.constant 0 : index
      %c0_38 = arith.constant 0 : index
      %71 = vector.load %arg6[%c0_37, %c0_38] : memref<8x1xf32, #tpu.memory_space<vmem>>, vector<8x1xf32>
      tpu.vector_store %arg6[%c0_37, %c0_38], %70 {strides = array<i32>} : memref<8x1xf32, #tpu.memory_space<vmem>>, vector<8x1xf32>,
      %cst_39 = arith.constant 0.000000e+00 : f32
      %72 = vector.broadcast %cst_39 : f32 to vector<8x1xf32>
      %c0_40 = arith.constant 0 : index
      %c0_41 = arith.constant 0 : index
      %73 = vector.load %arg7[%c0_40, %c0_41] : memref<8x1xf32, #tpu.memory_space<vmem>>, vector<8x1xf32>
      tpu.vector_store %arg7[%c0_40, %c0_41], %72 {strides = array<i32>} : memref<8x1xf32, #tpu.memory_space<vmem>>, vector<8x1xf32>,
    } else {
    }
    %c0 = arith.constant 0 : index
    %c0_1 = arith.constant 0 : index
    %3 = vector.load %arg2[%c0, %c0_1] : memref<8x32xf32, #tpu.memory_space<vmem>>, vector<8x32xf32>
    %c0_2 = arith.constant 0 : index
    %c0_3 = arith.constant 0 : index
    %4 = vector.load %arg3[%c0_2, %c0_3] : memref<32x8xf32, #tpu.memory_space<vmem>>, vector<32x8xf32>
    %cst = arith.constant dense<0.000000e+00> : vector<8x8xf32>
    %5 = tpu.matmul %3, %4, %cst {dimension_numbers = #tpu.dot_dimension_numbers<[1], [0], [0], [1], [0, 0, 1, 1], [], []>} : vector<8x32xf32>, vector<32x8xf32>, vector<8x8xf32> -> vector<8x8xf32>
    %c8_i32 = arith.constant 8 : i32
    %6 = arith.muli %arg0, %c8_i32 : i32
    %c8_i32_4 = arith.constant 8 : i32
    %7 = arith.muli %arg1, %c8_i32_4 : i32
    %8 = tpu.iota {dimensions = array<i32: 0>} : vector<8x1xi32>
    %9 = vector.broadcast %6 : i32 to vector<8x1xi32>
    %10 = arith.addi %9, %8 : vector<8x1xi32>
    %11 = tpu.iota {dimensions = array<i32: 1>} : vector<1x8xi32>
    %12 = vector.broadcast %7 : i32 to vector<1x8xi32>
    %13 = arith.addi %12, %11 : vector<1x8xi32>
    %c4_i32 = arith.constant 4 : i32
    %14 = arith.addi %6, %c4_i32 : i32
    %c8_i32_5 = arith.constant 8 : i32
    %c0_i32_6 = arith.constant 0 : i32
    %15 = arith.cmpi eq, %c8_i32_5, %c0_i32_6 : i32
    %c1_i32 = arith.constant 1 : i32
    %16 = arith.select %15, %c1_i32, %c8_i32_5 : i32
    %17 = arith.remsi %14, %16 : i32
    %c0_i32_7 = arith.constant 0 : i32
    %18 = arith.cmpi ne, %17, %c0_i32_7 : i32
    %c0_i32_8 = arith.constant 0 : i32
    %19 = arith.cmpi slt, %17, %c0_i32_8 : i32
    %c0_i32_9 = arith.constant 0 : i32
    %20 = arith.cmpi slt, %16, %c0_i32_9 : i32
    %21 = arith.xori %19, %20 : i1
    %22 = arith.andi %21, %18 : i1
    %23 = arith.addi %17, %16 : i32
    %24 = arith.select %22, %23, %17 : i32
    %c8_i32_10 = arith.constant 8 : i32
    %25 = arith.addi %24, %c8_i32_10 : i32
    %c8_i32_11 = arith.constant 8 : i32
    %26 = arith.cmpi sgt, %25, %c8_i32_11 : i32
    %c8_i32_12 = arith.constant 8 : i32
    %27 = arith.addi %7, %c8_i32_12 : i32
    %28 = arith.cmpi slt, %24, %27 : i32
    %c8_i32_13 = arith.constant 8 : i32
    %29 = arith.addi %24, %c8_i32_13 : i32
    %30 = arith.cmpi slt, %7, %29 : i32
    %31 = arith.andi %28, %30 : i1
    %c8_i32_14 = arith.constant 8 : i32
    %32 = arith.addi %7, %c8_i32_14 : i32
    %33 = arith.cmpi slt, %24, %32 : i32
    %c8_i32_15 = arith.constant 8 : i32
    %34 = arith.addi %24, %c8_i32_15 : i32
    %c8_i32_16 = arith.constant 8 : i32
    %35 = arith.subi %34, %c8_i32_16 : i32
    %36 = arith.cmpi slt, %7, %35 : i32
    %37 = arith.ori %33, %36 : i1
    %38 = arith.select %26, %37, %31 : i1
    %39 = arith.extui %38 : i1 to i32
    %c0_i32_17 = arith.constant 0 : i32
    %40 = arith.cmpi ne, %39, %c0_i32_17 : i32
    scf.if %40 {
      %c4_i32_33 = arith.constant 4 : i32
      %68 = vector.broadcast %c4_i32_33 : i32 to vector<8x1xi32>
      %69 = arith.addi %10, %68 : vector<8x1xi32>
      %c8_i32_34 = arith.constant 8 : i32
      %c0_i32_35 = arith.constant 0 : i32
      %70 = arith.cmpi eq, %c8_i32_34, %c0_i32_35 : i32
      %c1_i32_36 = arith.constant 1 : i32
      %71 = arith.select %70, %c1_i32_36, %c8_i32_34 : i32
      %72 = vector.broadcast %71 : i32 to vector<8x1xi32>
      %73 = arith.remsi %69, %72 : vector<8x1xi32>
      %c0_i32_37 = arith.constant 0 : i32
      %74 = vector.broadcast %c0_i32_37 : i32 to vector<8x1xi32>
      %75 = arith.cmpi ne, %73, %74 : vector<8x1xi32>
      %c0_i32_38 = arith.constant 0 : i32
      %76 = vector.broadcast %c0_i32_38 : i32 to vector<8x1xi32>
      %77 = arith.cmpi slt, %73, %76 : vector<8x1xi32>
      %c0_i32_39 = arith.constant 0 : i32
      %78 = arith.cmpi slt, %71, %c0_i32_39 : i32
      %79 = vector.broadcast %78 : i1 to vector<8x1xi1>
      %80 = vector.broadcast %79 : vector<8x1xi1> to vector<8x1xi1>
      %81 = arith.xori %77, %80 : vector<8x1xi1>
      %82 = arith.andi %81, %75 : vector<8x1xi1>
      %83 = vector.broadcast %71 : i32 to vector<8x1xi32>
      %84 = arith.addi %73, %83 : vector<8x1xi32>
      %85 = arith.select %82, %84, %73 : vector<8x1xi1>, vector<8x1xi32>
      %86 = vector.broadcast %85 : vector<8x1xi32> to vector<8x8xi32>
      %87 = vector.broadcast %13 : vector<1x8xi32> to vector<8x8xi32>
      %88 = arith.cmpi eq, %86, %87 : vector<8x8xi32>
      %c0_40 = arith.constant 0 : index
      %c0_41 = arith.constant 0 : index
      %89 = vector.load %arg7[%c0_40, %c0_41] : memref<8x1xf32, #tpu.memory_space<vmem>>, vector<8x1xf32>
      %cst_42 = arith.constant 0.000000e+00 : f32
      %90 = vector.broadcast %cst_42 : f32 to vector<8x8xf32>
      %91 = arith.select %88, %5, %90 : vector<8x8xi1>, vector<8x8xf32>
      %cst_43 = arith.constant dense<0.000000e+00> : vector<8xf32>
      %92 = vector.multi_reduction <add>, %91, %cst_43 [1] : vector<8x8xf32> to vector<8xf32>
      %93 = vector.shape_cast %92 : vector<8xf32> to vector<8x1xf32>
      %94 = arith.addf %89, %93 : vector<8x1xf32>
      %c0_44 = arith.constant 0 : index
      %c0_45 = arith.constant 0 : index
      %95 = vector.load %arg7[%c0_44, %c0_45] : memref<8x1xf32, #tpu.memory_space<vmem>>, vector<8x1xf32>
      tpu.vector_store %arg7[%c0_44, %c0_45], %94 {strides = array<i32>} : memref<8x1xf32, #tpu.memory_space<vmem>>, vector<8x1xf32>,
    } else {
    }
    %c8_i32_18 = arith.constant 8 : i32
    %41 = arith.addi %7, %c8_i32_18 : i32
    %42 = arith.cmpi slt, %6, %41 : i32
    %c8_i32_19 = arith.constant 8 : i32
    %43 = arith.addi %6, %c8_i32_19 : i32
    %44 = arith.cmpi slt, %7, %43 : i32
    %45 = arith.andi %42, %44 : i1
    %46 = arith.extui %45 : i1 to i32
    %c0_i32_20 = arith.constant 0 : i32
    %47 = arith.cmpi ne, %46, %c0_i32_20 : i32
    %48 = scf.if %47 -> (vector<8x8xf32>) {
      %68 = vector.broadcast %10 : vector<8x1xi32> to vector<8x8xi32>
      %69 = vector.broadcast %13 : vector<1x8xi32> to vector<8x8xi32>
      %70 = arith.cmpi eq, %68, %69 : vector<8x8xi32>
      %cst_33 = arith.constant 0xFF800000 : f32
      %71 = vector.broadcast %cst_33 : f32 to vector<8x8xf32>
      %72 = arith.select %70, %71, %5 : vector<8x8xi1>, vector<8x8xf32>
      scf.yield %72 : vector<8x8xf32>
    } else {
      scf.yield %5 : vector<8x8xf32>
    }
    %c0_21 = arith.constant 0 : index
    %c0_22 = arith.constant 0 : index
    %49 = vector.load %arg5[%c0_21, %c0_22] : memref<8x1xf32, #tpu.memory_space<vmem>>, vector<8x1xf32>
    %cst_23 = arith.constant dense<0xFF800000> : vector<8xf32>
    %50 = vector.multi_reduction <maximumf>, %48, %cst_23 [1] : vector<8x8xf32> to vector<8xf32>
    %51 = vector.shape_cast %50 : vector<8xf32> to vector<8x1xf32>
    %52 = arith.maximumf %49, %51 : vector<8x1xf32>
    %53 = arith.subf %49, %52 : vector<8x1xf32>
    %54 = math.exp %53 : vector<8x1xf32>
    %55 = vector.broadcast %52 : vector<8x1xf32> to vector<8x8xf32>
    %56 = arith.subf %48, %55 : vector<8x8xf32>
    %57 = math.exp %56 : vector<8x8xf32>
    %c0_24 = arith.constant 0 : index
    %c0_25 = arith.constant 0 : index
    %58 = vector.load %arg6[%c0_24, %c0_25] : memref<8x1xf32, #tpu.memory_space<vmem>>, vector<8x1xf32>
    %59 = arith.mulf %54, %58 : vector<8x1xf32>
    %cst_26 = arith.constant dense<0.000000e+00> : vector<8xf32>
    %60 = vector.multi_reduction <add>, %57, %cst_26 [1] : vector<8x8xf32> to vector<8xf32>
    %61 = vector.shape_cast %60 : vector<8xf32> to vector<8x1xf32>
    %62 = arith.addf %59, %61 : vector<8x1xf32>
    %c0_27 = arith.constant 0 : index
    %c0_28 = arith.constant 0 : index
    %63 = vector.load %arg6[%c0_27, %c0_28] : memref<8x1xf32, #tpu.memory_space<vmem>>, vector<8x1xf32>
    tpu.vector_store %arg6[%c0_27, %c0_28], %62 {strides = array<i32>} : memref<8x1xf32, #tpu.memory_space<vmem>>, vector<8x1xf32>,
    %c0_29 = arith.constant 0 : index
    %c0_30 = arith.constant 0 : index
    %64 = vector.load %arg5[%c0_29, %c0_30] : memref<8x1xf32, #tpu.memory_space<vmem>>, vector<8x1xf32>
    tpu.vector_store %arg5[%c0_29, %c0_30], %52 {strides = array<i32>} : memref<8x1xf32, #tpu.memory_space<vmem>>, vector<8x1xf32>,
    %c0_i32_31 = arith.constant 0 : i32
    %65 = arith.cmpi eq, %arg1, %c0_i32_31 : i32
    %66 = arith.extui %65 : i1 to i32
    %c0_i32_32 = arith.constant 0 : i32
    %67 = arith.cmpi ne, %66, %c0_i32_32 : i32
    scf.if %67 {
      %c0_33 = arith.constant 0 : index
      %c0_34 = arith.constant 0 : index
      %68 = vector.load %arg5[%c0_33, %c0_34] : memref<8x1xf32, #tpu.memory_space<vmem>>, vector<8x1xf32>
      %c0_35 = arith.constant 0 : index
      %c0_36 = arith.constant 0 : index
      %69 = vector.load %arg6[%c0_35, %c0_36] : memref<8x1xf32, #tpu.memory_space<vmem>>, vector<8x1xf32>
      %70 = math.log %69 : vector<8x1xf32>
      %71 = arith.addf %68, %70 : vector<8x1xf32>
      %c0_37 = arith.constant 0 : index
      %c0_38 = arith.constant 0 : index
      %72 = vector.load %arg7[%c0_37, %c0_38] : memref<8x1xf32, #tpu.memory_space<vmem>>, vector<8x1xf32>
      %73 = arith.subf %71, %72 : vector<8x1xf32>
      %cst_39 = arith.constant dense<0.000000e+00> : vector<1xf32>
      %74 = vector.multi_reduction <add>, %73, %cst_39 [0] : vector<8x1xf32> to vector<1xf32>
      %75 = vector.shape_cast %74 : vector<1xf32> to vector<1x1xf32>
      %76 = vector.shape_cast %75 : vector<1x1xf32> to vector<1x1x1xf32>
      %77 = vector.shape_cast %76 : vector<1x1x1xf32> to vector<1x1x1xf32>
      %78 = vector.broadcast %77 : vector<1x1x1xf32> to vector<1x1x128xf32>
      %c0_40 = arith.constant 0 : index
      %c0_41 = arith.constant 0 : index
      %c0_42 = arith.constant 0 : index
      %79 = vector.load %arg4[%c0_40, %c0_41, %c0_42] : memref<1x1x128xf32, #tpu.memory_space<vmem>>, vector<1x1x128xf32>
      tpu.vector_store %arg4[%c0_40, %c0_41, %c0_42], %78 {strides = array<i32>} : memref<1x1x128xf32, #tpu.memory_space<vmem>>, vector<1x1x128xf32>,
    } else {
    }
    return
  }
  func.func @transform_0(%arg0: i32, %arg1: i32) -> (i32, i32) {
    %c0_i32 = arith.constant 0 : i32
    %c0_i32_0 = arith.constant 0 : i32
    return %arg0, %c0_i32 : i32, i32
  }
  func.func @transform_1(%arg0: i32, %arg1: i32) -> (i32, i32) {
    %c0_i32 = arith.constant 0 : i32
    %c0_i32_0 = arith.constant 0 : i32
    return %c0_i32, %arg1 : i32, i32
  }
  func.func @transform_2(%arg0: i32, %arg1: i32) -> (i32, i32, i32) {
    %c0_i32 = arith.constant 0 : i32
    %c0_i32_0 = arith.constant 0 : i32
    %c0_i32_1 = arith.constant 0 : i32
    return %arg0, %c0_i32, %c0_i32_0 : i32, i32, i32
  }
}

</mosaic_0001>

<llo_original>
// kernel: tpu_custom_call.1
$region0: #{tpu_custom_call.1}
  #allocation0 [shape = 'u32[]', space=smem, size = 0x4, offset = 0x4, fixed_abs, tag = 'smem constant byte address 0x4 - core index']
  #allocation1 [shape = 'u32[144,128]{1,0:T(1,128)}', space=vmem, size = 0x12000, scoped, tag = 'internal scratch']
  #allocation2 [shape = 'f32[8,1]{1,0:T(8,128)}', space=vmem, size = 0x1000, scoped, tag = 'scratch operand']
  #allocation3 [shape = 'f32[8,1]{1,0:T(8,128)}', space=vmem, size = 0x1000, scoped, tag = 'scratch operand']
  #allocation4 [shape = 'f32[8,1]{1,0:T(8,128)}', space=vmem, size = 0x1000, scoped, tag = 'scratch operand']
  %s0 = inlined_call_operand.vmem [shape: f32[8,32], index: 0, kind: input, shape index: {}]
  %s1 = inlined_call_operand.vmem [shape: f32[32,8], index: 1, kind: input, shape index: {}]
  %s2 = inlined_call_operand.hbm [shape: f32[1,1,128], index: 2, kind: output, shape index: {}]
  %s3 = sld [smem:[#allocation0]]
  $region38: #{tpu_custom_call.1} parent=0
    _
  %s5 = ssub.s32 1, %s3
  %s6 = scalar_select 0, %s5, %s3
  $region1: #{tpu_custom_call.1} parent=0
    #allocation5 [shape = 'u8[512]{0}', space=vmem, size = 0x400, scoped, tag = 'output window, operand 0, single buffered']
    #allocation6 [shape = 's32[1]{0}', space=sflag, size = 0x4, scoped, tag = 'scoped memory for tpu_custom_call.1']
    %7 = vsyncpa [#allocation6], 0
    // Predicated region
    $region2: #{tpu_custom_call.1} parent=1 // pred_check
      _
    $region3: #{tpu_custom_call.1} parent=1 // pred_check_branch
      %9 = sbr.rel (0) target = $region5
    $region4: #{tpu_custom_call.1} parent=1 // pred_region
      _
    $region5: #{tpu_custom_call.1} parent=1 // pred_fallthru
      _
    // Predicated region
    $region6: #{tpu_custom_call.1} parent=1 // pred_check
      _
    $region7: #{tpu_custom_call.1} parent=1 // pred_check_branch
      %11 = sbr.rel (0) target = $region9
    $region8: #{tpu_custom_call.1} parent=1 // pred_region
      _
    $region9: #{tpu_custom_call.1} parent=1 // pred_fallthru
      _
    %p12 = scmp.eq.s32.totalorder 0, 0
    // Predicated region
    $region10: #{tpu_custom_call.1} parent=1 // pred_check
      %p13 = pneg %p12
    $region11: #{tpu_custom_call.1} parent=1 // pred_check_branch
      %15 = sbr.rel (%p13) target = $region13
    $region12: #{tpu_custom_call.1} parent=1 // pred_region
      %vm16 = vcmask 7168
      %17 = vst.msk [vmem:[#allocation2] sm:$0xff] %vm16, -inf
      %18 = vst.msk [vmem:[#allocation3] sm:$0xff] %vm16, 0.0
      %19 = vst.msk [vmem:[#allocation4] sm:$0xff] %vm16, 0.0
    $region13: #{tpu_custom_call.1} parent=1 // pred_fallthru
      _
    %v20 = vld [vmem:[%s0] sm:$0xff]
    %v21 = vld [vmem:[%s1] sm:$0xff]
    %v22 = vld [vmem:[%s1 + $0x8] sm:$0xff]
    %v23 = vld [vmem:[%s1 + $0x10] sm:$0xff]
    %v24 = vld [vmem:[%s1 + $0x18] sm:$0xff]
    %vm25 = vcmask 261120
    %v27 = vsel %vm25, %v20, 0
    %29 = vmatprep.subr.mxu0 0.0
    %30 = vmatpush1.msra.mxu0 0.0
    %31 = vmatprep.subr.mxu0 0.0
    %32 = vmatpush1.msra.mxu0 0.0
    %33 = vmatprep.subr.mxu0 0.0
    %34 = vmatpush1.msra.mxu0 0.0
    %35 = vmatprep.subr.mxu0 0.0
    %36 = vmatpush1.msra.mxu0 0.0
    %37 = vmatprep.subr.mxu0 0.0
    %38 = vmatpush1.msra.mxu0 0.0
    %39 = vmatprep.subr.mxu0 0.0
    %40 = vmatpush1.msra.mxu0 0.0
    %41 = vmatprep.subr.mxu0 0.0
    %42 = vmatpush1.msra.mxu0 0.0
    %43 = vmatprep.subr.mxu0 0.0
    %44 = vmatpush1.msra.mxu0 0.0
    %45 = vmatprep.subr.mxu0 0.0
    %46 = vmatpush1.msra.mxu0 0.0
    %47 = vmatprep.subr.mxu0 0.0
    %48 = vmatpush1.msra.mxu0 0.0
    %49 = vmatprep.subr.mxu0 0.0
    %50 = vmatpush1.msra.mxu0 0.0
    %51 = vmatprep.subr.mxu0 0.0
    %52 = vmatpush1.msra.mxu0 0.0
    %53 = vmatprep.subr.mxu0 0.0
    %54 = vmatpush1.msra.mxu0 %v24
    %55 = vmatprep.subr.mxu0 0.0
    %56 = vmatpush1.msra.mxu0 %v23
    %57 = vmatprep.subr.mxu0 0.0
    %58 = vmatpush1.msra.mxu0 %v22
    %59 = vmatprep.subr.mxu0 0.0
    %60 = vmatpush1.msra.mxu0 %v21
    %61 = vmatprep.subr.mxu0 0.0
    %62 = vmatpush2.msra.mxu0 0.0
    %63 = vmatprep.subr.mxu0 0.0
    %64 = vmatpush2.msra.mxu0 0.0
    %65 = vmatprep.subr.mxu0 0.0
    %66 = vmatpush2.msra.mxu0 0.0
    %67 = vmatprep.subr.mxu0 0.0
    %68 = vmatpush2.msra.mxu0 0.0
    %69 = vmatprep.subr.mxu0 0.0
    %70 = vmatpush2.msra.mxu0 0.0
    %71 = vmatprep.subr.mxu0 0.0
    %72 = vmatpush2.msra.mxu0 0.0
    %73 = vmatprep.subr.mxu0 0.0
    %74 = vmatpush2.msra.mxu0 0.0
    %75 = vmatprep.subr.mxu0 0.0
    %76 = vmatpush2.msra.mxu0 0.0
    %77 = vmatprep.subr.mxu0 0.0
    %78 = vmatpush2.msra.mxu0 0.0
    %79 = vmatprep.subr.mxu0 0.0
    %80 = vmatpush2.msra.mxu0 0.0
    %81 = vmatprep.subr.mxu0 0.0
    %82 = vmatpush2.msra.mxu0 0.0
    %83 = vmatprep.subr.mxu0 0.0
    %84 = vmatpush2.msra.mxu0 0.0
    %85 = vmatprep.subr.mxu0 0.0
    %86 = vmatpush2.msra.mxu0 0.0
    %87 = vmatprep.subr.mxu0 0.0
    %88 = vmatpush2.msra.mxu0 0.0
    %89 = vmatprep.subr.mxu0 0.0
    %90 = vmatpush2.msra.mxu0 0.0
    %91 = vmatprep.subr.mxu0 0.0
    %92 = vmatpush2.msra.mxu0 0.0
    %93 = vmatprep.mubr.f32.mxu0 0.0
    %94 = vmatmul.mubr.f32.gmra.mxu0 %v27
    %v95 = vpop.f32.mrf.mxu0
    %v96 = vadd.f32 0.0, %v95
    %v97 = vpop.f32.mrf.mxu0
    %98 = vdwg.mxu0
    %s99 = smul.u32 0, 8
    %s100 = smul.u32 0, 8
    %v101 = vlaneseq
    %v102 = vshrl.u32 %v101, 7
    %v103 = vstv %s99
    %v104 = vadd.s32 %v103, %v102
    %v105 = vlaneseq
    %v106 = vand.u32 %v105, 127
    %v107 = vstv %s100
    %v108 = vadd.s32 %v107, %v106
    %s109 = sadd.s32 %s99, 4
    %p110 = scmp.lt.s32.totalorder %s109, 0
    %s111 = ssub.s32 0, %s109
    %s112 = scalar_select %p110, %s111, %s109
    %s113 = sand.u32 %s112, 7
    %s114 = ssub.s32 0, %s113
    %s115 = scalar_select %p110, %s114, %s113
    %p116 = scmp.ne.s32.totalorder %s115, 0
    %p117 = scmp.lt.s32.totalorder %s115, 0
    %p118 = pnand %p117, %p116
    %p119 = pneg %p118
    %s120 = sadd.s32 %s115, 8
    %s121 = scalar_select %p119, %s120, %s115
    %s122 = sadd.s32 %s121, 8
    %p123 = scmp.gt.s32.totalorder %s122, 8
    %s124 = sadd.s32 %s100, 8
    %p125 = scmp.lt.s32.totalorder %s121, %s124
    %p126 = scmp.lt.s32.totalorder %s100, %s122
    %p127 = pnand %p125, %p126
    %p128 = pneg %p127
    %p129 = scmp.lt.s32.totalorder %s100, %s121
    %p130 = por %p125, %p129
    %s131 = scalar_select %p130, 1, 0
    %s132 = scalar_select %p128, 1, 0
    %s133 = scalar_select %p123, %s131, %s132
    %p134 = scmp.eq.s32.totalorder %s133, 1
    // Predicated region
    $region14: #{tpu_custom_call.1} parent=1 // pred_check
      %p135 = pneg %p134
    $region15: #{tpu_custom_call.1} parent=1 // pred_check_branch
      %137 = sbr.rel (%p135) target = $region17
    $region16: #{tpu_custom_call.1} parent=1 // pred_region
      %v138 = vadd.s32 %v104, 4
      %vm139 = vcmp.lt.s32.totalorder %v138, 0
      %v140 = vsub.s32 0, %v138
      %v141 = vsel %vm139, %v140, %v138
      %v142 = vshrl.u32 %v141, 3
      %v143 = vand.u32 %v141, 7
      %v144 = vsub.s32 0, %v143
      %v145 = vsel %vm139, %v144, %v143
      %vm146 = vcmp.ne.s32.totalorder %v145, 0
      %vm147 = vcmp.lt.s32.totalorder %v145, 0
      %vm148 = vmand %vm147, %vm146
      %v149 = vadd.s32 %v145, 8
      %v150 = vsel %vm148, %v149, %v145
      %vm151 = vcmp.eq.s32.totalorder %v150, %v108
      %v152 = vld [vmem:[#allocation4] sm:$0xff]
      %v153 = vsel %vm151, %v96, 0.0
      %vm154 = vcmask 64512
      %v155 = vsel %vm154, %v153, 0.0
      %156 = vadd.xlane.f32.xlu0 %v155
      %v157 = vpop.xlane.xlu0 %156
      %v158 = vadd.f32 %v152, %v157
      %vm159 = vcmask 7168
      %160 = vst.msk [vmem:[#allocation4] sm:$0xff] %vm159, %v158
    $region17: #{tpu_custom_call.1} parent=1 // pred_fallthru
      _
    %p161 = scmp.lt.s32.totalorder %s99, %s124
    %s162 = sadd.s32 %s99, 8
    %p163 = scmp.lt.s32.totalorder %s100, %s162
    %p164 = pnand %p161, %p163
    %p165 = pneg %p164
    // Predicated region
    $region18: #{tpu_custom_call.1} parent=1 // pred_check
      _
    $region19: #{tpu_custom_call.1} parent=1 // pred_check_branch
      %167 = sbr.rel (%p164) target = $region21
    $region20: #{tpu_custom_call.1} parent=1 // pred_region
      %vm168 = vcmp.eq.s32.totalorder %v104, %v108
      %v169 = vsel %vm168, -inf, %v96
    $region21: #{tpu_custom_call.1} parent=1 // pred_fallthru
      %v170 = vphi 0, %v169
    // Predicated region
    $region22: #{tpu_custom_call.1} parent=1 // pred_check
      %p171 = pneg %p164
    $region23: #{tpu_custom_call.1} parent=1 // pred_check_branch
      %173 = sbr.rel (%p171) target = $region25
    $region24: #{tpu_custom_call.1} parent=1 // pred_region
      _
    $region25: #{tpu_custom_call.1} parent=1 // pred_fallthru
      %v174 = vphi %v170, %v96
    %v175 = vld [vmem:[#allocation2] sm:$0xff]
    %vm176 = vcmask 64512
    %v177 = vsel %vm176, %v174, -inf
    %178 = vmax.xlane.f32.xlu0 %v177
    %v179 = vpop.xlane.xlu0 %178
    %v180 = vmax.f32 %v175, %v179
    %v181 = vsub.f32 %v175, %v180
    %v182 = vmul.f32 %v181, 1.442695
    %v183 = vpow.pop %v182
    %185 = vset.pattern.permute.xlu0 0
    %186 = vperm.xlu0 %185, %v180
    %v187 = vpop.permute.xlu0 %186
    %v189 = vsub.f32 %v174, %v187
    %v190 = vmul.f32 %v189, 1.442695
    %v191 = vpow.pop %v190
    %v192 = vld [vmem:[#allocation3] sm:$0xff]
    %v193 = vmul.f32 %v183, %v192
    %v194 = vsel %vm176, %v191, 0.0
    %195 = vadd.xlane.f32.xlu0 %v194
    %v196 = vpop.xlane.xlu0 %195
    %v197 = vadd.f32 %v193, %v196
    %vm198 = vcmask 7168
    %199 = vst.msk [vmem:[#allocation3] sm:$0xff] %vm198, %v197
    %200 = vst.msk [vmem:[#allocation2] sm:$0xff] %vm198, %v180
    // Predicated region
    $region26: #{tpu_custom_call.1} parent=1 // pred_check
      %p201 = pneg %p12
    $region27: #{tpu_custom_call.1} parent=1 // pred_check_branch
      %203 = sbr.rel (%p201) target = $region29
    $region28: #{tpu_custom_call.1} parent=1 // pred_region
      %v204 = vld [vmem:[#allocation2] sm:$0xff]
      %v205 = vld [vmem:[#allocation3] sm:$0xff]
      %v206 = vlog2.pop %v205
      %v207 = vmul.f32 %v206, 0.6931472
      %v208 = vadd.f32 %v204, %v207
      %v209 = vld [vmem:[#allocation4] sm:$0xff]
      %v210 = vsub.f32 %v208, %v209
      %v211 = vsel %vm198, %v210, 0.0
      %v212 = vrot.slane %v211, 4
      %v213 = vadd.f32 %v211, %v212
      %v214 = vrot.slane %v213, 2
      %v215 = vadd.f32 %v213, %v214
      %v216 = vrot.slane %v215, 1
      %v217 = vadd.f32 %v215, %v216
      %219 = vset.pattern.permute.xlu0 0
      %220 = vperm.xlu0 %219, %v217
      %v221 = vpop.permute.xlu0 %220
      %223 = vst [vmem:[#allocation5] sm:$0x1] %v221
    $region29: #{tpu_custom_call.1} parent=1 // pred_fallthru
      _
    // Predicated region
    $region30: #{tpu_custom_call.1} parent=1 // pred_check
      _
    $region31: #{tpu_custom_call.1} parent=1 // pred_check_branch
      %225 = sbr.rel (0) target = $region33
    $region32: #{tpu_custom_call.1} parent=1 // pred_region
      %s227 = ssub.s32 16, 16
      %228 = vsyncadd [#allocation6], %s227
      %s230 = sshll.u32 [#allocation5], 4
      %s231 = int_to_ptr.vmem [resolvable:$true] %s230
      %233 = dma.vmem_to_hbm [thread:$0]  %s231, 16, %s2, [#allocation6]
    $region33: #{tpu_custom_call.1} parent=1 // pred_fallthru
      _
    // Predicated region
    $region34: #{tpu_custom_call.1} parent=1 // pred_check
      _
    $region35: #{tpu_custom_call.1} parent=1 // pred_check_branch
      %235 = sbr.rel (0) target = $region37
    $region36: #{tpu_custom_call.1} parent=1 // pred_region
      %236 = dma.done [#allocation6], 16
    $region37: #{tpu_custom_call.1} parent=1 // pred_fallthru
      _
    %237 = vsyncpa [#allocation6], 1

</llo_original>
